<compile_context>
chip_gen: v7x
topology: tpu7x:2x2x1
jax: 0.10.0
libtpu: 0.0.40
codegen_flags: <defaults>
</compile_context>

<pallas_src>
import jax
import jax.numpy as jnp
from jax.experimental import pallas as pl
from jax.experimental.pallas import tpu as pltpu


# ---------------------------------------------------------------------------
# Helpers
# ---------------------------------------------------------------------------
def _round_up(n, m):
    return ((n + m - 1) // m) * m


# ---------------------------------------------------------------------------
# Fused Pallas kernel (whole network in one kernel body, per batch row-tile)
# ---------------------------------------------------------------------------
def _make_fused_kernel(n_fc1, n_fc2):
    """Kernel refs: (alphas SMEM, x, w_stack, b_stack, feat_out, dos_out)."""

    def kernel(alphas_ref, x_ref, w_ref, b_ref, feat_ref, dos_ref):
        def linear(h, l):
            # bf16 feed to the MXU, f32 accumulate, f32 bias add.
            y = jnp.dot(h.astype(jnp.bfloat16), w_ref[l],
                        preferred_element_type=jnp.float32)
            return y + b_ref[l]

        h = x_ref[...]
        l = 0
        a = 0

        # FC_1: Linear + PReLU
        for _ in range(n_fc1):
            y = linear(h, l)
            l += 1
            alpha = alphas_ref[a]          # scalar read from SMEM
            a += 1
            h = jnp.where(y >= 0.0, y, alpha * y)

        # feature head
        feat = linear(h, l)
        l += 1
        feat_ref[...] = feat

        # FC_2: Linear + PReLU (input is the feature)
        h = feat
        for _ in range(n_fc2):
            y = linear(h, l)
            l += 1
            alpha = alphas_ref[a]
            a += 1
            h = jnp.where(y >= 0.0, y, alpha * y)

        # property head
        dos_ref[...] = linear(h, l)

    return kernel


def make_pfp_forward(meta):
    """Returns a jitted forward(alphas, w_stack, b_stack, x) -> (feature, dos)."""
    n_fc1 = meta["n_fc1"]
    n_fc2 = meta["n_fc2"]
    F = meta["F_channels"]
    P = meta["P_channels"]
    D_pad = meta["D_pad"]
    n_layers = n_fc1 + 1 + n_fc2 + 1
    kernel = _make_fused_kernel(n_fc1, n_fc2)

    @jax.jit
    def forward(alphas, w_stack, b_stack, x):
        B, K = x.shape
        # Batch padded to a multiple of 16 (bf16 sublane packing); row tiles
        # capped at 256 so VMEM stays bounded as B grows (v7x: 64 MiB).
        B16 = _round_up(max(B, 16), 16)
        TB = min(256, B16)
        B_pad = _round_up(B16, TB)
        grid = (B_pad // TB,)

        # Single pad op (no zeros + dynamic-update-slice round trip).
        x_pad = jnp.pad(x.astype(jnp.float32),
                        ((0, B_pad - B), (0, D_pad - K)))

        cost = pl.CostEstimate(
            flops=2 * B_pad * D_pad * D_pad * n_layers,
            transcendentals=0,
            bytes_accessed=(w_stack.size * w_stack.dtype.itemsize
                            + b_stack.size * 4
                            + x_pad.size * 4
                            + 2 * B_pad * D_pad * 4),
        )

        feat_pad, dos_pad = pl.pallas_call(
            kernel,
            out_shape=(
                jax.ShapeDtypeStruct((B_pad, D_pad), jnp.float32),
                jax.ShapeDtypeStruct((B_pad, D_pad), jnp.float32),
            ),
            grid=grid,
            in_specs=[
                # PReLU alphas: tiny, scalar path.
                pl.BlockSpec(memory_space=pltpu.MemorySpace.SMEM),
                # Input row tile (pipelined over the batch grid axis).
                pl.BlockSpec((TB, D_pad), lambda i: (i, 0)),
                # Stacked weights / biases: constant block index -> stay
                # VMEM-resident across all grid iterations.
                pl.BlockSpec((n_layers, D_pad, D_pad), lambda i: (0, 0, 0)),
                pl.BlockSpec((n_layers, 1, D_pad), lambda i: (0, 0, 0)),
            ],
            out_specs=(
                pl.BlockSpec((TB, D_pad), lambda i: (i, 0)),
                pl.BlockSpec((TB, D_pad), lambda i: (i, 0)),
            ),
            compiler_params=pltpu.CompilerParams(
                dimension_semantics=("parallel",)),
            cost_estimate=cost,
        )(alphas, x_pad, w_stack, b_stack)

        return feat_pad[:B, :F], dos_pad[:B, :P]

    return forward


# ---------------------------------------------------------------------------
# Parameter construction (mirrors PFP_Network.__init__ shapes; deterministic)
# ---------------------------------------------------------------------------
def _init_linear(key, in_features, out_features):
    kw, kb = jax.random.split(key)
    bound = 1.0 / jnp.sqrt(jnp.float32(in_features))
    # Stored already transposed: (in_features, out_features)
    w_t = jax.random.uniform(
        kw, (in_features, out_features), jnp.float32, -bound, bound)
    b = jax.random.uniform(kb, (out_features,), jnp.float32, -bound, bound)
    return w_t, b


def init_pfp_params(key, P_channels, hidden_layers_nodes_1,
                    hidden_layers_nodes_2, F_channels):
    params = {"FC_1": [], "FC_2": []}
    in_size = P_channels
    for h in hidden_layers_nodes_1:
        key, sub = jax.random.split(key)
        w_t, b = _init_linear(sub, in_size, h)
        alpha = jnp.array([0.25], dtype=jnp.float32)  # nn.PReLU() default
        params["FC_1"].append((w_t, b, alpha))
        in_size = h
    key, sub = jax.random.split(key)
    params["feature"] = _init_linear(sub, hidden_layers_nodes_1[-1], F_channels)

    in_size = F_channels
    for h in hidden_layers_nodes_2:
        key, sub = jax.random.split(key)
        w_t, b = _init_linear(sub, in_size, h)
        alpha = jnp.array([0.25], dtype=jnp.float32)
        params["FC_2"].append((w_t, b, alpha))
        in_size = h
    key, sub = jax.random.split(key)
    params["property"] = _init_linear(sub, hidden_layers_nodes_2[-1], P_channels)
    return params


def pack_pfp_params(params, P_channels, F_channels):
    """Stack all layers into one padded bf16 weight tensor + f32 bias tensor.

    All in/out dims are zero-padded to a common D_pad (multiple of 128 lanes);
    padded lanes stay exactly 0 through bias-add and PReLU, so padding is
    mathematically inert and is sliced off in the wrapper.
    """
    layers = []
    alphas = []
    for (w_t, b, alpha) in params["FC_1"]:
        layers.append((w_t, b))
        alphas.append(alpha[0])
    layers.append(params["feature"])
    for (w_t, b, alpha) in params["FC_2"]:
        layers.append((w_t, b))
        alphas.append(alpha[0])
    layers.append(params["property"])

    max_dim = max(max(w.shape) for w, _ in layers)
    D_pad = _round_up(max_dim, 128)

    w_stack = jnp.stack([
        jnp.pad(w, ((0, D_pad - w.shape[0]), (0, D_pad - w.shape[1])))
        for w, _ in layers
    ]).astype(jnp.bfloat16)
    b_stack = jnp.stack([
        jnp.pad(b, (0, D_pad - b.shape[0])).reshape(1, -1)
        for _, b in layers
    ]).astype(jnp.float32)
    alphas = (jnp.stack(alphas).astype(jnp.float32)
              if alphas else jnp.zeros((1,), jnp.float32))

    meta = dict(
        n_fc1=len(params["FC_1"]),
        n_fc2=len(params["FC_2"]),
        F_channels=F_channels,
        P_channels=P_channels,
        D_pad=D_pad,
    )
    return alphas, w_stack, b_stack, meta


# ---------------------------------------------------------------------------
# Pure-JAX reference mirroring the kernel math (bf16 dot, f32 accumulate,
# f32 bias/PReLU) for the correctness check.
# ---------------------------------------------------------------------------
def pfp_forward_ref(params, x):
    def lin(h, w_t, b):
        y = jnp.dot(h.astype(jnp.bfloat16), w_t.astype(jnp.bfloat16),
                    preferred_element_type=jnp.float32)
        return y + b[None, :]

    h = x
    for (w_t, b, alpha) in params["FC_1"]:
        y = lin(h, w_t, b)
        h = jnp.where(y >= 0.0, y, alpha[0] * y)
    w_t, b = params["feature"]
    feature = lin(h, w_t, b)

    h = feature
    for (w_t, b, alpha) in params["FC_2"]:
        y = lin(h, w_t, b)
        h = jnp.where(y >= 0.0, y, alpha[0] * y)
    w_t, b = params["property"]
    dos_out = lin(h, w_t, b)
    return feature, dos_out


if __name__ == "__main__":
    # Module-consistent small shapes:
    #   P_channels=16, hidden_layers_nodes_1=[32, 32],
    #   hidden_layers_nodes_2=[32, 32], F_channels=8
    P_channels = 16
    hidden_1 = [32, 32]
    hidden_2 = [32, 32]
    F_channels = 8

    key = jax.random.PRNGKey(0)
    key_params, key_x = jax.random.split(key)

    params = init_pfp_params(
        key_params, P_channels, hidden_1, hidden_2, F_channels)
    alphas, w_stack, b_stack, meta = pack_pfp_params(
        params, P_channels, F_channels)
    forward = make_pfp_forward(meta)

    # Exercise both the single-tile path and the multi-tile (grid > 1) path.
    for batch in (32, 384):
        x = jax.random.normal(key_x, (batch, P_channels), dtype=jnp.float32)

        feature, dos_out = forward(alphas, w_stack, b_stack, x)
        feature = jax.block_until_ready(feature)
        dos_out = jax.block_until_ready(dos_out)

        assert feature.shape == (batch, F_channels)
        assert dos_out.shape == (batch, P_channels)

        feat_ref, dos_ref = pfp_forward_ref(params, x)
        assert jnp.allclose(feature, feat_ref, atol=5e-3, rtol=5e-3), (
            float(jnp.max(jnp.abs(feature - feat_ref))))
        assert jnp.allclose(dos_out, dos_ref, atol=5e-3, rtol=5e-3), (
            float(jnp.max(jnp.abs(dos_out - dos_ref))))

    print("KERNEL_OK")
</pallas_src>

<mosaic_0001>
module attributes {stable_mosaic.version = 11 : i64} {
  func.func @kernel(%arg0: i32, %arg1: memref<4xf32, #tpu.memory_space<smem>>, %arg2: memref<32x128xf32, #tpu.memory_space<vmem>>, %arg3: memref<6x128x128xbf16, #tpu.memory_space<vmem>>, %arg4: memref<6x1x128xf32, #tpu.memory_space<vmem>>, %arg5: memref<32x128xf32, #tpu.memory_space<vmem>>, %arg6: memref<32x128xf32, #tpu.memory_space<vmem>>) attributes {dimension_semantics = [#tpu.dimension_semantics<parallel>], iteration_bounds = array<i64: 1>, scalar_prefetch = 0 : i64, scratch_operands = 0 : i64, tpu.core_type = #tpu.core_type<tc>, window_params = [{transform_indices = @transform_0, window_bounds = array<i64: 4>}, {transform_indices = @transform_1, window_bounds = array<i64: 32, 128>}, {pipeline_mode = #tpu.pipeline_mode<synchronous>, transform_indices = @transform_2, window_bounds = array<i64: 6, 128, 128>}, {pipeline_mode = #tpu.pipeline_mode<synchronous>, transform_indices = @transform_3, window_bounds = array<i64: 6, 1, 128>}, {transform_indices = @transform_4, window_bounds = array<i64: 32, 128>}, {transform_indices = @transform_5, window_bounds = array<i64: 32, 128>}]} {
    %c0 = arith.constant 0 : index
    %c0_0 = arith.constant 0 : index
    %0 = vector.load %arg2[%c0, %c0_0] : memref<32x128xf32, #tpu.memory_space<vmem>>, vector<32x128xf32>
    %1 = arith.truncf %0 : vector<32x128xf32> to vector<32x128xbf16>
    %c0_1 = arith.constant 0 : index
    %c0_2 = arith.constant 0 : index
    %c0_3 = arith.constant 0 : index
    %2 = vector.load %arg3[%c0_1, %c0_2, %c0_3] : memref<6x128x128xbf16, #tpu.memory_space<vmem>>, vector<1x128x128xbf16>
    %3 = vector.shape_cast %2 : vector<1x128x128xbf16> to vector<128x128xbf16>
    %cst = arith.constant dense<0.000000e+00> : vector<32x128xf32>
    %4 = tpu.matmul %1, %3, %cst {dimension_numbers = #tpu.dot_dimension_numbers<[1], [0], [0], [1], [0, 0, 1, 1], [], []>} : vector<32x128xbf16>, vector<128x128xbf16>, vector<32x128xf32> -> vector<32x128xf32>
    %c0_4 = arith.constant 0 : index
    %c0_5 = arith.constant 0 : index
    %c0_6 = arith.constant 0 : index
    %5 = vector.load %arg4[%c0_4, %c0_5, %c0_6] : memref<6x1x128xf32, #tpu.memory_space<vmem>>, vector<1x1x128xf32>
    %6 = vector.shape_cast %5 : vector<1x1x128xf32> to vector<1x128xf32>
    %7 = vector.broadcast %6 : vector<1x128xf32> to vector<32x128xf32>
    %8 = arith.addf %4, %7 : vector<32x128xf32>
    %c0_7 = arith.constant 0 : index
    %9 = memref.load %arg1[%c0_7] : memref<4xf32, #tpu.memory_space<smem>>
    %cst_8 = arith.constant 0.000000e+00 : f32
    %10 = vector.broadcast %cst_8 : f32 to vector<32x128xf32>
    %11 = arith.cmpf oge, %8, %10 : vector<32x128xf32>
    %12 = vector.broadcast %9 : f32 to vector<32x128xf32>
    %13 = arith.mulf %12, %8 : vector<32x128xf32>
    %14 = arith.select %11, %8, %13 : vector<32x128xi1>, vector<32x128xf32>
    %15 = arith.truncf %14 : vector<32x128xf32> to vector<32x128xbf16>
    %c1 = arith.constant 1 : index
    %c0_9 = arith.constant 0 : index
    %c0_10 = arith.constant 0 : index
    %16 = vector.load %arg3[%c1, %c0_9, %c0_10] : memref<6x128x128xbf16, #tpu.memory_space<vmem>>, vector<1x128x128xbf16>
    %17 = vector.shape_cast %16 : vector<1x128x128xbf16> to vector<128x128xbf16>
    %cst_11 = arith.constant dense<0.000000e+00> : vector<32x128xf32>
    %18 = tpu.matmul %15, %17, %cst_11 {dimension_numbers = #tpu.dot_dimension_numbers<[1], [0], [0], [1], [0, 0, 1, 1], [], []>} : vector<32x128xbf16>, vector<128x128xbf16>, vector<32x128xf32> -> vector<32x128xf32>
    %c1_12 = arith.constant 1 : index
    %c0_13 = arith.constant 0 : index
    %c0_14 = arith.constant 0 : index
    %19 = vector.load %arg4[%c1_12, %c0_13, %c0_14] : memref<6x1x128xf32, #tpu.memory_space<vmem>>, vector<1x1x128xf32>
    %20 = vector.shape_cast %19 : vector<1x1x128xf32> to vector<1x128xf32>
    %21 = vector.broadcast %20 : vector<1x128xf32> to vector<32x128xf32>
    %22 = arith.addf %18, %21 : vector<32x128xf32>
    %c1_15 = arith.constant 1 : index
    %23 = memref.load %arg1[%c1_15] : memref<4xf32, #tpu.memory_space<smem>>
    %cst_16 = arith.constant 0.000000e+00 : f32
    %24 = vector.broadcast %cst_16 : f32 to vector<32x128xf32>
    %25 = arith.cmpf oge, %22, %24 : vector<32x128xf32>
    %26 = vector.broadcast %23 : f32 to vector<32x128xf32>
    %27 = arith.mulf %26, %22 : vector<32x128xf32>
    %28 = arith.select %25, %22, %27 : vector<32x128xi1>, vector<32x128xf32>
    %29 = arith.truncf %28 : vector<32x128xf32> to vector<32x128xbf16>
    %c2 = arith.constant 2 : index
    %c0_17 = arith.constant 0 : index
    %c0_18 = arith.constant 0 : index
    %30 = vector.load %arg3[%c2, %c0_17, %c0_18] : memref<6x128x128xbf16, #tpu.memory_space<vmem>>, vector<1x128x128xbf16>
    %31 = vector.shape_cast %30 : vector<1x128x128xbf16> to vector<128x128xbf16>
    %cst_19 = arith.constant dense<0.000000e+00> : vector<32x128xf32>
    %32 = tpu.matmul %29, %31, %cst_19 {dimension_numbers = #tpu.dot_dimension_numbers<[1], [0], [0], [1], [0, 0, 1, 1], [], []>} : vector<32x128xbf16>, vector<128x128xbf16>, vector<32x128xf32> -> vector<32x128xf32>
    %c2_20 = arith.constant 2 : index
    %c0_21 = arith.constant 0 : index
    %c0_22 = arith.constant 0 : index
    %33 = vector.load %arg4[%c2_20, %c0_21, %c0_22] : memref<6x1x128xf32, #tpu.memory_space<vmem>>, vector<1x1x128xf32>
    %34 = vector.shape_cast %33 : vector<1x1x128xf32> to vector<1x128xf32>
    %35 = vector.broadcast %34 : vector<1x128xf32> to vector<32x128xf32>
    %36 = arith.addf %32, %35 : vector<32x128xf32>
    %c0_23 = arith.constant 0 : index
    %c0_24 = arith.constant 0 : index
    %37 = vector.load %arg5[%c0_23, %c0_24] : memref<32x128xf32, #tpu.memory_space<vmem>>, vector<32x128xf32>
    tpu.vector_store %arg5[%c0_23, %c0_24], %36 {strides = array<i32>} : memref<32x128xf32, #tpu.memory_space<vmem>>, vector<32x128xf32>,
    %38 = arith.truncf %36 : vector<32x128xf32> to vector<32x128xbf16>
    %c3 = arith.constant 3 : index
    %c0_25 = arith.constant 0 : index
    %c0_26 = arith.constant 0 : index
    %39 = vector.load %arg3[%c3, %c0_25, %c0_26] : memref<6x128x128xbf16, #tpu.memory_space<vmem>>, vector<1x128x128xbf16>
    %40 = vector.shape_cast %39 : vector<1x128x128xbf16> to vector<128x128xbf16>
    %cst_27 = arith.constant dense<0.000000e+00> : vector<32x128xf32>
    %41 = tpu.matmul %38, %40, %cst_27 {dimension_numbers = #tpu.dot_dimension_numbers<[1], [0], [0], [1], [0, 0, 1, 1], [], []>} : vector<32x128xbf16>, vector<128x128xbf16>, vector<32x128xf32> -> vector<32x128xf32>
    %c3_28 = arith.constant 3 : index
    %c0_29 = arith.constant 0 : index
    %c0_30 = arith.constant 0 : index
    %42 = vector.load %arg4[%c3_28, %c0_29, %c0_30] : memref<6x1x128xf32, #tpu.memory_space<vmem>>, vector<1x1x128xf32>
    %43 = vector.shape_cast %42 : vector<1x1x128xf32> to vector<1x128xf32>
    %44 = vector.broadcast %43 : vector<1x128xf32> to vector<32x128xf32>
    %45 = arith.addf %41, %44 : vector<32x128xf32>
    %c2_31 = arith.constant 2 : index
    %46 = memref.load %arg1[%c2_31] : memref<4xf32, #tpu.memory_space<smem>>
    %cst_32 = arith.constant 0.000000e+00 : f32
    %47 = vector.broadcast %cst_32 : f32 to vector<32x128xf32>
    %48 = arith.cmpf oge, %45, %47 : vector<32x128xf32>
    %49 = vector.broadcast %46 : f32 to vector<32x128xf32>
    %50 = arith.mulf %49, %45 : vector<32x128xf32>
    %51 = arith.select %48, %45, %50 : vector<32x128xi1>, vector<32x128xf32>
    %52 = arith.truncf %51 : vector<32x128xf32> to vector<32x128xbf16>
    %c4 = arith.constant 4 : index
    %c0_33 = arith.constant 0 : index
    %c0_34 = arith.constant 0 : index
    %53 = vector.load %arg3[%c4, %c0_33, %c0_34] : memref<6x128x128xbf16, #tpu.memory_space<vmem>>, vector<1x128x128xbf16>
    %54 = vector.shape_cast %53 : vector<1x128x128xbf16> to vector<128x128xbf16>
    %cst_35 = arith.constant dense<0.000000e+00> : vector<32x128xf32>
    %55 = tpu.matmul %52, %54, %cst_35 {dimension_numbers = #tpu.dot_dimension_numbers<[1], [0], [0], [1], [0, 0, 1, 1], [], []>} : vector<32x128xbf16>, vector<128x128xbf16>, vector<32x128xf32> -> vector<32x128xf32>
    %c4_36 = arith.constant 4 : index
    %c0_37 = arith.constant 0 : index
    %c0_38 = arith.constant 0 : index
    %56 = vector.load %arg4[%c4_36, %c0_37, %c0_38] : memref<6x1x128xf32, #tpu.memory_space<vmem>>, vector<1x1x128xf32>
    %57 = vector.shape_cast %56 : vector<1x1x128xf32> to vector<1x128xf32>
    %58 = vector.broadcast %57 : vector<1x128xf32> to vector<32x128xf32>
    %59 = arith.addf %55, %58 : vector<32x128xf32>
    %c3_39 = arith.constant 3 : index
    %60 = memref.load %arg1[%c3_39] : memref<4xf32, #tpu.memory_space<smem>>
    %cst_40 = arith.constant 0.000000e+00 : f32
    %61 = vector.broadcast %cst_40 : f32 to vector<32x128xf32>
    %62 = arith.cmpf oge, %59, %61 : vector<32x128xf32>
    %63 = vector.broadcast %60 : f32 to vector<32x128xf32>
    %64 = arith.mulf %63, %59 : vector<32x128xf32>
    %65 = arith.select %62, %59, %64 : vector<32x128xi1>, vector<32x128xf32>
    %66 = arith.truncf %65 : vector<32x128xf32> to vector<32x128xbf16>
    %c5 = arith.constant 5 : index
    %c0_41 = arith.constant 0 : index
    %c0_42 = arith.constant 0 : index
    %67 = vector.load %arg3[%c5, %c0_41, %c0_42] : memref<6x128x128xbf16, #tpu.memory_space<vmem>>, vector<1x128x128xbf16>
    %68 = vector.shape_cast %67 : vector<1x128x128xbf16> to vector<128x128xbf16>
    %cst_43 = arith.constant dense<0.000000e+00> : vector<32x128xf32>
    %69 = tpu.matmul %66, %68, %cst_43 {dimension_numbers = #tpu.dot_dimension_numbers<[1], [0], [0], [1], [0, 0, 1, 1], [], []>} : vector<32x128xbf16>, vector<128x128xbf16>, vector<32x128xf32> -> vector<32x128xf32>
    %c5_44 = arith.constant 5 : index
    %c0_45 = arith.constant 0 : index
    %c0_46 = arith.constant 0 : index
    %70 = vector.load %arg4[%c5_44, %c0_45, %c0_46] : memref<6x1x128xf32, #tpu.memory_space<vmem>>, vector<1x1x128xf32>
    %71 = vector.shape_cast %70 : vector<1x1x128xf32> to vector<1x128xf32>
    %72 = vector.broadcast %71 : vector<1x128xf32> to vector<32x128xf32>
    %73 = arith.addf %69, %72 : vector<32x128xf32>
    %c0_47 = arith.constant 0 : index
    %c0_48 = arith.constant 0 : index
    %74 = vector.load %arg6[%c0_47, %c0_48] : memref<32x128xf32, #tpu.memory_space<vmem>>, vector<32x128xf32>
    tpu.vector_store %arg6[%c0_47, %c0_48], %73 {strides = array<i32>} : memref<32x128xf32, #tpu.memory_space<vmem>>, vector<32x128xf32>,
    return
  }
  func.func @transform_0(%arg0: i32) -> i32 {
    %c0_i32 = arith.constant 0 : i32
    %c0_i32_0 = arith.constant 0 : i32
    return %c0_i32 : i32
  }
  func.func @transform_1(%arg0: i32) -> (i32, i32) {
    %c0_i32 = arith.constant 0 : i32
    %c0_i32_0 = arith.constant 0 : i32
    return %arg0, %c0_i32 : i32, i32
  }
  func.func @transform_2(%arg0: i32) -> (i32, i32, i32) {
    %c0_i32 = arith.constant 0 : i32
    %c0_i32_0 = arith.constant 0 : i32
    %c0_i32_1 = arith.constant 0 : i32
    %c0_i32_2 = arith.constant 0 : i32
    return %c0_i32, %c0_i32_0, %c0_i32_1 : i32, i32, i32
  }
  func.func @transform_3(%arg0: i32) -> (i32, i32, i32) {
    %c0_i32 = arith.constant 0 : i32
    %c0_i32_0 = arith.constant 0 : i32
    %c0_i32_1 = arith.constant 0 : i32
    %c0_i32_2 = arith.constant 0 : i32
    return %c0_i32, %c0_i32_0, %c0_i32_1 : i32, i32, i32
  }
  func.func @transform_4(%arg0: i32) -> (i32, i32) {
    %c0_i32 = arith.constant 0 : i32
    %c0_i32_0 = arith.constant 0 : i32
    return %arg0, %c0_i32 : i32, i32
  }
  func.func @transform_5(%arg0: i32) -> (i32, i32) {
    %c0_i32 = arith.constant 0 : i32
    %c0_i32_0 = arith.constant 0 : i32
    return %arg0, %c0_i32 : i32, i32
  }
}

</mosaic_0001>

<llo_original>
// kernel: forward.1
$region0: #{forward.1}
  #allocation0 [shape = 'u32[]', space=smem, size = 0x4, offset = 0x4, fixed_abs, tag = 'smem constant byte address 0x4 - core index']
  #allocation1 [shape = 'u32[144,128]{1,0:T(1,128)}', space=vmem, size = 0x12000, scoped, tag = 'internal scratch']
  %s0 = inlined_call_operand.vmem [shape: f32[4], index: 0, kind: input, shape index: {}]
  %s1 = inlined_call_operand.vmem [shape: f32[32,128], index: 1, kind: input, shape index: {}]
  %s2 = inlined_call_operand.hbm [shape: bf16[6,128,128], index: 2, kind: input, shape index: {}]
  %s3 = inlined_call_operand.vmem [shape: f32[6,1,128], index: 3, kind: input, shape index: {}]
  %s4 = inlined_call_operand.vmem [shape: f32[32,128], index: 4, kind: output, shape index: {0}]
  %s5 = inlined_call_operand.vmem [shape: f32[32,128], index: 5, kind: output, shape index: {1}]
  %6 = xla_tuple %s4, %s5
  %s7 = sld [smem:[#allocation0]]
  $region42: #{forward.1} parent=0
    _
  %s9 = ssub.s32 1, %s7
  %s10 = scalar_select 0, %s9, %s7
  $region1: #{forward.1} parent=0
    #allocation2 [shape = 'u8[512]{0}', space=smem, size = 0x200, scoped, tag = 'input window, operand 0, single buffered']
    #allocation3 [shape = 's32[1]{0}', space=sflag, size = 0x4, scoped, tag = 'scoped memory for forward.1']
    #allocation4 [shape = 's32[1]{0}', space=sflag, size = 0x4, scoped, tag = 'scoped memory for forward.1']
    #allocation5 [shape = 'u8[196608]{0}', space=vmem, size = 0x30000, scoped, tag = 'input window, operand 2, single buffered']
    %11 = vsyncpa [#allocation4], 0
    %12 = vsyncpa [#allocation3], 0
    // Predicated region
    $region2: #{forward.1} parent=1 // pred_check
      _
    $region3: #{forward.1} parent=1 // pred_check_branch
      %14 = sbr.rel (0) target = $region5
    $region4: #{forward.1} parent=1 // pred_region
      %s16 = ssub.s32 16, 16
      %17 = vsyncadd [#allocation4], %s16
      %s19 = sshll.u32 %s0, 4
      %s20 = int_to_ptr.vmem [resolvable:$true] %s19
      %22 = dma.vmem_to_smem %s20, 16, [#allocation2], [#allocation4]
    $region5: #{forward.1} parent=1 // pred_fallthru
      _
    // Predicated region
    $region6: #{forward.1} parent=1 // pred_check
      _
    $region7: #{forward.1} parent=1 // pred_check_branch
      %24 = sbr.rel (0) target = $region9
    $region8: #{forward.1} parent=1 // pred_region
      _
    $region9: #{forward.1} parent=1 // pred_fallthru
      _
    // Predicated region
    $region10: #{forward.1} parent=1 // pred_check
      _
    $region11: #{forward.1} parent=1 // pred_check_branch
      %26 = sbr.rel (0) target = $region13
    $region12: #{forward.1} parent=1 // pred_region
      %s28 = ssub.s32 6144, 6144
      %29 = vsyncadd [#allocation3], %s28
      %s30 = sshll.u32 [#allocation5], 4
      %s31 = int_to_ptr.vmem [resolvable:$true] %s30
      %36 = dma.hbm_to_vmem [thread:$0]  %s2, 6144, %s31, [#allocation3], 64, 64, 4
    $region13: #{forward.1} parent=1 // pred_fallthru
      _
    // Predicated region
    $region14: #{forward.1} parent=1 // pred_check
      _
    $region15: #{forward.1} parent=1 // pred_check_branch
      %38 = sbr.rel (0) target = $region17
    $region16: #{forward.1} parent=1 // pred_region
      _
    $region17: #{forward.1} parent=1 // pred_fallthru
      _
    // Predicated region
    $region18: #{forward.1} parent=1 // pred_check
      _
    $region19: #{forward.1} parent=1 // pred_check_branch
      %40 = sbr.rel (0) target = $region21
    $region20: #{forward.1} parent=1 // pred_region
      %41 = dma.done [#allocation4], 16
    $region21: #{forward.1} parent=1 // pred_fallthru
      _
    // Predicated region
    $region22: #{forward.1} parent=1 // pred_check
      _
    $region23: #{forward.1} parent=1 // pred_check_branch
      %43 = sbr.rel (0) target = $region25
    $region24: #{forward.1} parent=1 // pred_region
      %44 = dma.done [#allocation3], 6144
    $region25: #{forward.1} parent=1 // pred_fallthru
      _
    %45 = sfence
    %v47 = vld [vmem:[%s1] sm:$0xff]
    %v48 = vld [vmem:[%s1 + $0x8] sm:$0xff]
    %v49 = vld [vmem:[%s1 + $0x10] sm:$0xff]
    %v50 = vld [vmem:[%s1 + $0x18] sm:$0xff]
    %v51 = vpack.c.bf16 %v48, %v47
    %v52 = vpack.c.bf16 %v50, %v49
    %v53 = vld [vmem:[#allocation5] sm:$0xf]
    %v54 = vld [vmem:[#allocation5 + $0x4] sm:$0xf]
    %v55 = vld [vmem:[#allocation5 + $0x8] sm:$0xf]
    %v56 = vld [vmem:[#allocation5 + $0xc] sm:$0xf]
    %v57 = vld [vmem:[#allocation5 + $0x10] sm:$0xf]
    %v58 = vld [vmem:[#allocation5 + $0x14] sm:$0xf]
    %v59 = vld [vmem:[#allocation5 + $0x18] sm:$0xf]
    %v60 = vld [vmem:[#allocation5 + $0x1c] sm:$0xf]
    %v61 = vld [vmem:[#allocation5 + $0x20] sm:$0xf]
    %v62 = vld [vmem:[#allocation5 + $0x24] sm:$0xf]
    %v63 = vld [vmem:[#allocation5 + $0x28] sm:$0xf]
    %v64 = vld [vmem:[#allocation5 + $0x2c] sm:$0xf]
    %v65 = vld [vmem:[#allocation5 + $0x30] sm:$0xf]
    %v66 = vld [vmem:[#allocation5 + $0x34] sm:$0xf]
    %v67 = vld [vmem:[#allocation5 + $0x38] sm:$0xf]
    %v68 = vld [vmem:[#allocation5 + $0x3c] sm:$0xf]
    %v69 = vld [vmem:[%s3] sm:$0x1]
    %v71 = vlaneseq
    %v72 = vshrl.u32 %v71, 7
    %v73 = vsub.s32 0, %v72
    %v74 = vrot.slane %v69, %v73
    %v92 = vunpack.c.l.b16 %v53
    %v93 = vunpack.c.l.b16 %v54
    %v94 = vunpack.c.l.b16 %v55
    %v95 = vunpack.c.l.b16 %v56
    %v96 = vunpack.c.l.b16 %v57
    %v97 = vunpack.c.l.b16 %v58
    %v98 = vunpack.c.l.b16 %v59
    %v99 = vunpack.c.l.b16 %v60
    %v100 = vunpack.c.l.b16 %v61
    %v101 = vunpack.c.l.b16 %v62
    %v102 = vunpack.c.l.b16 %v63
    %v103 = vunpack.c.l.b16 %v64
    %v104 = vunpack.c.l.b16 %v65
    %v105 = vunpack.c.l.b16 %v66
    %v106 = vunpack.c.l.b16 %v67
    %v107 = vunpack.c.l.b16 %v68
    %v108 = vpack.c.b16 %v93, %v92
    %v109 = vpack.c.b16 %v95, %v94
    %v110 = vpack.c.b16 %v97, %v96
    %v111 = vpack.c.b16 %v99, %v98
    %v112 = vpack.c.b16 %v101, %v100
    %v113 = vpack.c.b16 %v103, %v102
    %v114 = vpack.c.b16 %v105, %v104
    %v115 = vpack.c.b16 %v107, %v106
    %124 = vmatprep.subr.bf16.mxu0 0
    %125 = vmatpush1.bf16.msra.mxu0 %v108
    %126 = vmatprep.subr.bf16.mxu0 0
    %127 = vmatpush1.bf16.msra.mxu0 %v109
    %128 = vmatprep.subr.bf16.mxu0 0
    %129 = vmatpush1.bf16.msra.mxu0 %v110
    %130 = vmatprep.subr.bf16.mxu0 0
    %131 = vmatpush1.bf16.msra.mxu0 %v111
    %132 = vmatprep.subr.bf16.mxu0 0
    %133 = vmatpush1.bf16.msra.mxu0 %v112
    %134 = vmatprep.subr.bf16.mxu0 0
    %135 = vmatpush1.bf16.msra.mxu0 %v113
    %136 = vmatprep.subr.bf16.mxu0 0
    %137 = vmatpush1.bf16.msra.mxu0 %v114
    %138 = vmatprep.subr.bf16.mxu0 0
    %139 = vmatpush1.bf16.msra.mxu0 %v115
    %140 = vmatprep.subr.bf16.mxu0 0
    %141 = vmatpush1.bf16.msra.mxu0 0
    %142 = vmatprep.subr.bf16.mxu0 0
    %143 = vmatpush1.bf16.msra.mxu0 0
    %144 = vmatprep.subr.bf16.mxu0 0
    %145 = vmatpush1.bf16.msra.mxu0 0
    %146 = vmatprep.subr.bf16.mxu0 0
    %147 = vmatpush1.bf16.msra.mxu0 0
    %148 = vmatprep.subr.bf16.mxu0 0
    %149 = vmatpush1.bf16.msra.mxu0 0
    %150 = vmatprep.subr.bf16.mxu0 0
    %151 = vmatpush1.bf16.msra.mxu0 0
    %152 = vmatprep.subr.bf16.mxu0 0
    %153 = vmatpush1.bf16.msra.mxu0 0
    %154 = vmatprep.subr.bf16.mxu0 0
    %155 = vmatpush1.bf16.msra.mxu0 0
    %156 = vmatprep.mubr.bf16.mxu0 0
    %157 = vmatmul.mubr.bf16.gmra.mrb[0].mxu0 %v51
    %v158 = vpop.f32.mrb[0].mxu0
    %v159 = vadd.f32 %v74, %v158
    %v160 = vpop.f32.mrb[0].mxu0
    %v161 = vpop.f32.mrb[0].mxu0
    %v162 = vadd.f32 %v74, %v161
    %v163 = vpop.f32.mrb[0].mxu0
    %164 = vmatprep.mubr.bf16.mxu0 0
    %165 = vmatmul.mubr.bf16.gmra.mrb[0].mxu0 %v52
    %v166 = vpop.f32.mrb[0].mxu0
    %v167 = vadd.f32 %v74, %v166
    %v168 = vpop.f32.mrb[0].mxu0
    %v169 = vpop.f32.mrb[0].mxu0
    %v170 = vadd.f32 %v74, %v169
    %v171 = vpop.f32.mrb[0].mxu0
    %172 = vdwg.mxu0
    %s173 = sld [smem:[#allocation2]]
    %vm174 = vcmp.ge.f32.partialorder %v159, 0.0
    %vm175 = vcmp.ge.f32.partialorder %v162, 0.0
    %vm176 = vcmp.ge.f32.partialorder %v167, 0.0
    %vm177 = vcmp.ge.f32.partialorder %v170, 0.0
    %v178 = vstv %s173
    %v179 = vmul.f32 %v178, %v159
    %v180 = vmul.f32 %v178, %v162
    %v181 = vmul.f32 %v178, %v167
    %v182 = vmul.f32 %v178, %v170
    %v183 = vsel %vm174, %v159, %v179
    %v184 = vsel %vm175, %v162, %v180
    %v185 = vsel %vm176, %v167, %v181
    %v186 = vsel %vm177, %v170, %v182
    %v187 = vpack.c.bf16 %v184, %v183
    %v188 = vpack.c.bf16 %v186, %v185
    %s189 = scalar_lea.vmem [#allocation5], 64
    %v190 = vld [vmem:[%s189] sm:$0xf]
    %v191 = vld [vmem:[%s189 + $0x4] sm:$0xf]
    %v192 = vld [vmem:[%s189 + $0x8] sm:$0xf]
    %v193 = vld [vmem:[%s189 + $0xc] sm:$0xf]
    %v194 = vld [vmem:[%s189 + $0x10] sm:$0xf]
    %v195 = vld [vmem:[%s189 + $0x14] sm:$0xf]
    %v196 = vld [vmem:[%s189 + $0x18] sm:$0xf]
    %v197 = vld [vmem:[%s189 + $0x1c] sm:$0xf]
    %v198 = vld [vmem:[%s189 + $0x20] sm:$0xf]
    %v199 = vld [vmem:[%s189 + $0x24] sm:$0xf]
    %v200 = vld [vmem:[%s189 + $0x28] sm:$0xf]
    %v201 = vld [vmem:[%s189 + $0x2c] sm:$0xf]
    %v202 = vld [vmem:[%s189 + $0x30] sm:$0xf]
    %v203 = vld [vmem:[%s189 + $0x34] sm:$0xf]
    %v204 = vld [vmem:[%s189 + $0x38] sm:$0xf]
    %v205 = vld [vmem:[%s189 + $0x3c] sm:$0xf]
    %s206 = scalar_lea.vmem %s3, 1
    %v207 = vld [vmem:[%s206] sm:$0x1]
    %v209 = vlaneseq
    %v210 = vshrl.u32 %v209, 7
    %v211 = vsub.s32 0, %v210
    %v212 = vrot.slane %v207, %v211
    %v230 = vunpack.c.l.b16 %v190
    %v231 = vunpack.c.l.b16 %v191
    %v232 = vunpack.c.l.b16 %v192
    %v233 = vunpack.c.l.b16 %v193
    %v234 = vunpack.c.l.b16 %v194
    %v235 = vunpack.c.l.b16 %v195
    %v236 = vunpack.c.l.b16 %v196
    %v237 = vunpack.c.l.b16 %v197
    %v238 = vunpack.c.l.b16 %v198
    %v239 = vunpack.c.l.b16 %v199
    %v240 = vunpack.c.l.b16 %v200
    %v241 = vunpack.c.l.b16 %v201
    %v242 = vunpack.c.l.b16 %v202
    %v243 = vunpack.c.l.b16 %v203
    %v244 = vunpack.c.l.b16 %v204
    %v245 = vunpack.c.l.b16 %v205
    %v246 = vpack.c.b16 %v231, %v230
    %v247 = vpack.c.b16 %v233, %v232
    %v248 = vpack.c.b16 %v235, %v234
    %v249 = vpack.c.b16 %v237, %v236
    %v250 = vpack.c.b16 %v239, %v238
    %v251 = vpack.c.b16 %v241, %v240
    %v252 = vpack.c.b16 %v243, %v242
    %v253 = vpack.c.b16 %v245, %v244
    %262 = vmatprep.subr.bf16.mxu0 0
    %263 = vmatpush1.bf16.msra.mxu0 %v246
    %264 = vmatprep.subr.bf16.mxu0 0
    %265 = vmatpush1.bf16.msra.mxu0 %v247
    %266 = vmatprep.subr.bf16.mxu0 0
    %267 = vmatpush1.bf16.msra.mxu0 %v248
    %268 = vmatprep.subr.bf16.mxu0 0
    %269 = vmatpush1.bf16.msra.mxu0 %v249
    %270 = vmatprep.subr.bf16.mxu0 0
    %271 = vmatpush1.bf16.msra.mxu0 %v250
    %272 = vmatprep.subr.bf16.mxu0 0
    %273 = vmatpush1.bf16.msra.mxu0 %v251
    %274 = vmatprep.subr.bf16.mxu0 0
    %275 = vmatpush1.bf16.msra.mxu0 %v252
    %276 = vmatprep.subr.bf16.mxu0 0
    %277 = vmatpush1.bf16.msra.mxu0 %v253
    %278 = vmatprep.subr.bf16.mxu0 0
    %279 = vmatpush1.bf16.msra.mxu0 0
    %280 = vmatprep.subr.bf16.mxu0 0
    %281 = vmatpush1.bf16.msra.mxu0 0
    %282 = vmatprep.subr.bf16.mxu0 0
    %283 = vmatpush1.bf16.msra.mxu0 0
    %284 = vmatprep.subr.bf16.mxu0 0
    %285 = vmatpush1.bf16.msra.mxu0 0
    %286 = vmatprep.subr.bf16.mxu0 0
    %287 = vmatpush1.bf16.msra.mxu0 0
    %288 = vmatprep.subr.bf16.mxu0 0
    %289 = vmatpush1.bf16.msra.mxu0 0
    %290 = vmatprep.subr.bf16.mxu0 0
    %291 = vmatpush1.bf16.msra.mxu0 0
    %292 = vmatprep.subr.bf16.mxu0 0
    %293 = vmatpush1.bf16.msra.mxu0 0
    %294 = vmatprep.mubr.bf16.mxu0 0
    %295 = vmatmul.mubr.bf16.gmra.mrb[0].mxu0 %v187
    %v296 = vpop.f32.mrb[0].mxu0
    %v297 = vadd.f32 %v212, %v296
    %v298 = vpop.f32.mrb[0].mxu0
    %v299 = vpop.f32.mrb[0].mxu0
    %v300 = vadd.f32 %v212, %v299
    %v301 = vpop.f32.mrb[0].mxu0
    %302 = vmatprep.mubr.bf16.mxu0 0
    %303 = vmatmul.mubr.bf16.gmra.mrb[0].mxu0 %v188
    %v304 = vpop.f32.mrb[0].mxu0
    %v305 = vadd.f32 %v212, %v304
    %v306 = vpop.f32.mrb[0].mxu0
    %v307 = vpop.f32.mrb[0].mxu0
    %v308 = vadd.f32 %v212, %v307
    %v309 = vpop.f32.mrb[0].mxu0
    %310 = vdwg.mxu0
    %s311 = sld [smem:[#allocation2 + $0x1]]
    %vm312 = vcmp.ge.f32.partialorder %v297, 0.0
    %vm313 = vcmp.ge.f32.partialorder %v300, 0.0
    %vm314 = vcmp.ge.f32.partialorder %v305, 0.0
    %vm315 = vcmp.ge.f32.partialorder %v308, 0.0
    %v316 = vstv %s311
    %v317 = vmul.f32 %v316, %v297
    %v318 = vmul.f32 %v316, %v300
    %v319 = vmul.f32 %v316, %v305
    %v320 = vmul.f32 %v316, %v308
    %v321 = vsel %vm312, %v297, %v317
    %v322 = vsel %vm313, %v300, %v318
    %v323 = vsel %vm314, %v305, %v319
    %v324 = vsel %vm315, %v308, %v320
    %v325 = vpack.c.bf16 %v322, %v321
    %v326 = vpack.c.bf16 %v324, %v323
    %s327 = scalar_lea.vmem [#allocation5], 128
    %v328 = vld [vmem:[%s327] sm:$0xf]
    %v329 = vld [vmem:[%s327 + $0x4] sm:$0xf]
    %v330 = vld [vmem:[%s327 + $0x8] sm:$0xf]
    %v331 = vld [vmem:[%s327 + $0xc] sm:$0xf]
    %v332 = vld [vmem:[%s327 + $0x10] sm:$0xf]
    %v333 = vld [vmem:[%s327 + $0x14] sm:$0xf]
    %v334 = vld [vmem:[%s327 + $0x18] sm:$0xf]
    %v335 = vld [vmem:[%s327 + $0x1c] sm:$0xf]
    %v336 = vld [vmem:[%s327 + $0x20] sm:$0xf]
    %v337 = vld [vmem:[%s327 + $0x24] sm:$0xf]
    %v338 = vld [vmem:[%s327 + $0x28] sm:$0xf]
    %v339 = vld [vmem:[%s327 + $0x2c] sm:$0xf]
    %v340 = vld [vmem:[%s327 + $0x30] sm:$0xf]
    %v341 = vld [vmem:[%s327 + $0x34] sm:$0xf]
    %v342 = vld [vmem:[%s327 + $0x38] sm:$0xf]
    %v343 = vld [vmem:[%s327 + $0x3c] sm:$0xf]
    %s344 = scalar_lea.vmem %s3, 2
    %v345 = vld [vmem:[%s344] sm:$0x1]
    %v347 = vlaneseq
    %v348 = vshrl.u32 %v347, 7
    %v349 = vsub.s32 0, %v348
    %v350 = vrot.slane %v345, %v349
    %v368 = vunpack.c.l.b16 %v328
    %v369 = vunpack.c.l.b16 %v329
    %v370 = vunpack.c.l.b16 %v330
    %v371 = vunpack.c.l.b16 %v331
    %v372 = vunpack.c.l.b16 %v332
    %v373 = vunpack.c.l.b16 %v333
    %v374 = vunpack.c.l.b16 %v334
    %v375 = vunpack.c.l.b16 %v335
    %v376 = vunpack.c.l.b16 %v336
    %v377 = vunpack.c.l.b16 %v337
    %v378 = vunpack.c.l.b16 %v338
    %v379 = vunpack.c.l.b16 %v339
    %v380 = vunpack.c.l.b16 %v340
    %v381 = vunpack.c.l.b16 %v341
    %v382 = vunpack.c.l.b16 %v342
    %v383 = vunpack.c.l.b16 %v343
    %v384 = vpack.c.b16 %v369, %v368
    %v385 = vpack.c.b16 %v371, %v370
    %v386 = vpack.c.b16 %v373, %v372
    %v387 = vpack.c.b16 %v375, %v374
    %v388 = vpack.c.b16 %v377, %v376
    %v389 = vpack.c.b16 %v379, %v378
    %v390 = vpack.c.b16 %v381, %v380
    %v391 = vpack.c.b16 %v383, %v382
    %400 = vmatprep.subr.bf16.mxu0 0
    %401 = vmatpush1.bf16.msra.mxu0 %v384
    %402 = vmatprep.subr.bf16.mxu0 0
    %403 = vmatpush1.bf16.msra.mxu0 %v385
    %404 = vmatprep.subr.bf16.mxu0 0
    %405 = vmatpush1.bf16.msra.mxu0 %v386
    %406 = vmatprep.subr.bf16.mxu0 0
    %407 = vmatpush1.bf16.msra.mxu0 %v387
    %408 = vmatprep.subr.bf16.mxu0 0
    %409 = vmatpush1.bf16.msra.mxu0 %v388
    %410 = vmatprep.subr.bf16.mxu0 0
    %411 = vmatpush1.bf16.msra.mxu0 %v389
    %412 = vmatprep.subr.bf16.mxu0 0
    %413 = vmatpush1.bf16.msra.mxu0 %v390
    %414 = vmatprep.subr.bf16.mxu0 0
    %415 = vmatpush1.bf16.msra.mxu0 %v391
    %416 = vmatprep.subr.bf16.mxu0 0
    %417 = vmatpush1.bf16.msra.mxu0 0
    %418 = vmatprep.subr.bf16.mxu0 0
    %419 = vmatpush1.bf16.msra.mxu0 0
    %420 = vmatprep.subr.bf16.mxu0 0
    %421 = vmatpush1.bf16.msra.mxu0 0
    %422 = vmatprep.subr.bf16.mxu0 0
    %423 = vmatpush1.bf16.msra.mxu0 0
    %424 = vmatprep.subr.bf16.mxu0 0
    %425 = vmatpush1.bf16.msra.mxu0 0
    %426 = vmatprep.subr.bf16.mxu0 0
    %427 = vmatpush1.bf16.msra.mxu0 0
    %428 = vmatprep.subr.bf16.mxu0 0
    %429 = vmatpush1.bf16.msra.mxu0 0
    %430 = vmatprep.subr.bf16.mxu0 0
    %431 = vmatpush1.bf16.msra.mxu0 0
    %432 = vmatprep.mubr.bf16.mxu0 0
    %433 = vmatmul.mubr.bf16.gmra.mrb[0].mxu0 %v325
    %v434 = vpop.f32.mrb[0].mxu0
    %v435 = vadd.f32 %v350, %v434
    %v436 = vpop.f32.mrb[0].mxu0
    %v437 = vpop.f32.mrb[0].mxu0
    %v438 = vadd.f32 %v350, %v437
    %v439 = vpop.f32.mrb[0].mxu0
    %440 = vmatprep.mubr.bf16.mxu0 0
    %441 = vmatmul.mubr.bf16.gmra.mrb[0].mxu0 %v326
    %v442 = vpop.f32.mrb[0].mxu0
    %v443 = vadd.f32 %v350, %v442
    %v444 = vpop.f32.mrb[0].mxu0
    %v445 = vpop.f32.mrb[0].mxu0
    %v446 = vadd.f32 %v350, %v445
    %v447 = vpop.f32.mrb[0].mxu0
    %448 = vdwg.mxu0
    %449 = vst [vmem:[%s4] sm:$0xff] %v435
    %450 = vst [vmem:[%s4 + $0x8] sm:$0xff] %v438
    %451 = vst [vmem:[%s4 + $0x10] sm:$0xff] %v443
    %452 = vst [vmem:[%s4 + $0x18] sm:$0xff] %v446
    %v453 = vpack.c.bf16 %v438, %v435
    %v454 = vpack.c.bf16 %v446, %v443
    %s455 = scalar_lea.vmem [#allocation5], 192
    %v456 = vld [vmem:[%s455] sm:$0xf]
    %v457 = vld [vmem:[%s455 + $0x4] sm:$0xf]
    %v458 = vld [vmem:[%s455 + $0x8] sm:$0xf]
    %v459 = vld [vmem:[%s455 + $0xc] sm:$0xf]
    %v460 = vld [vmem:[%s455 + $0x10] sm:$0xf]
    %v461 = vld [vmem:[%s455 + $0x14] sm:$0xf]
    %v462 = vld [vmem:[%s455 + $0x18] sm:$0xf]
    %v463 = vld [vmem:[%s455 + $0x1c] sm:$0xf]
    %v464 = vld [vmem:[%s455 + $0x20] sm:$0xf]
    %v465 = vld [vmem:[%s455 + $0x24] sm:$0xf]
    %v466 = vld [vmem:[%s455 + $0x28] sm:$0xf]
    %v467 = vld [vmem:[%s455 + $0x2c] sm:$0xf]
    %v468 = vld [vmem:[%s455 + $0x30] sm:$0xf]
    %v469 = vld [vmem:[%s455 + $0x34] sm:$0xf]
    %v470 = vld [vmem:[%s455 + $0x38] sm:$0xf]
    %v471 = vld [vmem:[%s455 + $0x3c] sm:$0xf]
    %s472 = scalar_lea.vmem %s3, 3
    %v473 = vld [vmem:[%s472] sm:$0x1]
    %v475 = vlaneseq
    %v476 = vshrl.u32 %v475, 7
    %v477 = vsub.s32 0, %v476
    %v478 = vrot.slane %v473, %v477
    %v496 = vunpack.c.l.b16 %v456
    %v497 = vunpack.c.l.b16 %v457
    %v498 = vunpack.c.l.b16 %v458
    %v499 = vunpack.c.l.b16 %v459
    %v500 = vunpack.c.l.b16 %v460
    %v501 = vunpack.c.l.b16 %v461
    %v502 = vunpack.c.l.b16 %v462
    %v503 = vunpack.c.l.b16 %v463
    %v504 = vunpack.c.l.b16 %v464
    %v505 = vunpack.c.l.b16 %v465
    %v506 = vunpack.c.l.b16 %v466
    %v507 = vunpack.c.l.b16 %v467
    %v508 = vunpack.c.l.b16 %v468
    %v509 = vunpack.c.l.b16 %v469
    %v510 = vunpack.c.l.b16 %v470
    %v511 = vunpack.c.l.b16 %v471
    %v512 = vpack.c.b16 %v497, %v496
    %v513 = vpack.c.b16 %v499, %v498
    %v514 = vpack.c.b16 %v501, %v500
    %v515 = vpack.c.b16 %v503, %v502
    %v516 = vpack.c.b16 %v505, %v504
    %v517 = vpack.c.b16 %v507, %v506
    %v518 = vpack.c.b16 %v509, %v508
    %v519 = vpack.c.b16 %v511, %v510
    %528 = vmatprep.subr.bf16.mxu0 0
    %529 = vmatpush1.bf16.msra.mxu0 %v512
    %530 = vmatprep.subr.bf16.mxu0 0
    %531 = vmatpush1.bf16.msra.mxu0 %v513
    %532 = vmatprep.subr.bf16.mxu0 0
    %533 = vmatpush1.bf16.msra.mxu0 %v514
    %534 = vmatprep.subr.bf16.mxu0 0
    %535 = vmatpush1.bf16.msra.mxu0 %v515
    %536 = vmatprep.subr.bf16.mxu0 0
    %537 = vmatpush1.bf16.msra.mxu0 %v516
    %538 = vmatprep.subr.bf16.mxu0 0
    %539 = vmatpush1.bf16.msra.mxu0 %v517
    %540 = vmatprep.subr.bf16.mxu0 0
    %541 = vmatpush1.bf16.msra.mxu0 %v518
    %542 = vmatprep.subr.bf16.mxu0 0
    %543 = vmatpush1.bf16.msra.mxu0 %v519
    %544 = vmatprep.subr.bf16.mxu0 0
    %545 = vmatpush1.bf16.msra.mxu0 0
    %546 = vmatprep.subr.bf16.mxu0 0
    %547 = vmatpush1.bf16.msra.mxu0 0
    %548 = vmatprep.subr.bf16.mxu0 0
    %549 = vmatpush1.bf16.msra.mxu0 0
    %550 = vmatprep.subr.bf16.mxu0 0
    %551 = vmatpush1.bf16.msra.mxu0 0
    %552 = vmatprep.subr.bf16.mxu0 0
    %553 = vmatpush1.bf16.msra.mxu0 0
    %554 = vmatprep.subr.bf16.mxu0 0
    %555 = vmatpush1.bf16.msra.mxu0 0
    %556 = vmatprep.subr.bf16.mxu0 0
    %557 = vmatpush1.bf16.msra.mxu0 0
    %558 = vmatprep.subr.bf16.mxu0 0
    %559 = vmatpush1.bf16.msra.mxu0 0
    %560 = vmatprep.mubr.bf16.mxu0 0
    %561 = vmatmul.mubr.bf16.gmra.mrb[0].mxu0 %v453
    %v562 = vpop.f32.mrb[0].mxu0
    %v563 = vadd.f32 %v478, %v562
    %v564 = vpop.f32.mrb[0].mxu0
    %v565 = vpop.f32.mrb[0].mxu0
    %v566 = vadd.f32 %v478, %v565
    %v567 = vpop.f32.mrb[0].mxu0
    %568 = vmatprep.mubr.bf16.mxu0 0
    %569 = vmatmul.mubr.bf16.gmra.mrb[0].mxu0 %v454
    %v570 = vpop.f32.mrb[0].mxu0
    %v571 = vadd.f32 %v478, %v570
    %v572 = vpop.f32.mrb[0].mxu0
    %v573 = vpop.f32.mrb[0].mxu0
    %v574 = vadd.f32 %v478, %v573
    %v575 = vpop.f32.mrb[0].mxu0
    %576 = vdwg.mxu0
    %s577 = sld [smem:[#allocation2 + $0x2]]
    %vm578 = vcmp.ge.f32.partialorder %v563, 0.0
    %vm579 = vcmp.ge.f32.partialorder %v566, 0.0
    %vm580 = vcmp.ge.f32.partialorder %v571, 0.0
    %vm581 = vcmp.ge.f32.partialorder %v574, 0.0
    %v582 = vstv %s577
    %v583 = vmul.f32 %v582, %v563
    %v584 = vmul.f32 %v582, %v566
    %v585 = vmul.f32 %v582, %v571
    %v586 = vmul.f32 %v582, %v574
    %v587 = vsel %vm578, %v563, %v583
    %v588 = vsel %vm579, %v566, %v584
    %v589 = vsel %vm580, %v571, %v585
    %v590 = vsel %vm581, %v574, %v586
    %v591 = vpack.c.bf16 %v588, %v587
    %v592 = vpack.c.bf16 %v590, %v589
    %s593 = scalar_lea.vmem [#allocation5], 256
    %v594 = vld [vmem:[%s593] sm:$0xf]
    %v595 = vld [vmem:[%s593 + $0x4] sm:$0xf]
    %v596 = vld [vmem:[%s593 + $0x8] sm:$0xf]
    %v597 = vld [vmem:[%s593 + $0xc] sm:$0xf]
    %v598 = vld [vmem:[%s593 + $0x10] sm:$0xf]
    %v599 = vld [vmem:[%s593 + $0x14] sm:$0xf]
    %v600 = vld [vmem:[%s593 + $0x18] sm:$0xf]
    %v601 = vld [vmem:[%s593 + $0x1c] sm:$0xf]
    %v602 = vld [vmem:[%s593 + $0x20] sm:$0xf]
    %v603 = vld [vmem:[%s593 + $0x24] sm:$0xf]
    %v604 = vld [vmem:[%s593 + $0x28] sm:$0xf]
    %v605 = vld [vmem:[%s593 + $0x2c] sm:$0xf]
    %v606 = vld [vmem:[%s593 + $0x30] sm:$0xf]
    %v607 = vld [vmem:[%s593 + $0x34] sm:$0xf]
    %v608 = vld [vmem:[%s593 + $0x38] sm:$0xf]
    %v609 = vld [vmem:[%s593 + $0x3c] sm:$0xf]
    %s610 = scalar_lea.vmem %s3, 4
    %v611 = vld [vmem:[%s610] sm:$0x1]
    %v613 = vlaneseq
    %v614 = vshrl.u32 %v613, 7
    %v615 = vsub.s32 0, %v614
    %v616 = vrot.slane %v611, %v615
    %v634 = vunpack.c.l.b16 %v594
    %v635 = vunpack.c.l.b16 %v595
    %v636 = vunpack.c.l.b16 %v596
    %v637 = vunpack.c.l.b16 %v597
    %v638 = vunpack.c.l.b16 %v598
    %v639 = vunpack.c.l.b16 %v599
    %v640 = vunpack.c.l.b16 %v600
    %v641 = vunpack.c.l.b16 %v601
    %v642 = vunpack.c.l.b16 %v602
    %v643 = vunpack.c.l.b16 %v603
    %v644 = vunpack.c.l.b16 %v604
    %v645 = vunpack.c.l.b16 %v605
    %v646 = vunpack.c.l.b16 %v606
    %v647 = vunpack.c.l.b16 %v607
    %v648 = vunpack.c.l.b16 %v608
    %v649 = vunpack.c.l.b16 %v609
    %v650 = vpack.c.b16 %v635, %v634
    %v651 = vpack.c.b16 %v637, %v636
    %v652 = vpack.c.b16 %v639, %v638
    %v653 = vpack.c.b16 %v641, %v640
    %v654 = vpack.c.b16 %v643, %v642
    %v655 = vpack.c.b16 %v645, %v644
    %v656 = vpack.c.b16 %v647, %v646
    %v657 = vpack.c.b16 %v649, %v648
    %666 = vmatprep.subr.bf16.mxu0 0
    %667 = vmatpush1.bf16.msra.mxu0 %v650
    %668 = vmatprep.subr.bf16.mxu0 0
    %669 = vmatpush1.bf16.msra.mxu0 %v651
    %670 = vmatprep.subr.bf16.mxu0 0
    %671 = vmatpush1.bf16.msra.mxu0 %v652
    %672 = vmatprep.subr.bf16.mxu0 0
    %673 = vmatpush1.bf16.msra.mxu0 %v653
    %674 = vmatprep.subr.bf16.mxu0 0
    %675 = vmatpush1.bf16.msra.mxu0 %v654
    %676 = vmatprep.subr.bf16.mxu0 0
    %677 = vmatpush1.bf16.msra.mxu0 %v655
    %678 = vmatprep.subr.bf16.mxu0 0
    %679 = vmatpush1.bf16.msra.mxu0 %v656
    %680 = vmatprep.subr.bf16.mxu0 0
    %681 = vmatpush1.bf16.msra.mxu0 %v657
    %682 = vmatprep.subr.bf16.mxu0 0
    %683 = vmatpush1.bf16.msra.mxu0 0
    %684 = vmatprep.subr.bf16.mxu0 0
    %685 = vmatpush1.bf16.msra.mxu0 0
    %686 = vmatprep.subr.bf16.mxu0 0
    %687 = vmatpush1.bf16.msra.mxu0 0
    %688 = vmatprep.subr.bf16.mxu0 0
    %689 = vmatpush1.bf16.msra.mxu0 0
    %690 = vmatprep.subr.bf16.mxu0 0
    %691 = vmatpush1.bf16.msra.mxu0 0
    %692 = vmatprep.subr.bf16.mxu0 0
    %693 = vmatpush1.bf16.msra.mxu0 0
    %694 = vmatprep.subr.bf16.mxu0 0
    %695 = vmatpush1.bf16.msra.mxu0 0
    %696 = vmatprep.subr.bf16.mxu0 0
    %697 = vmatpush1.bf16.msra.mxu0 0
    %698 = vmatprep.mubr.bf16.mxu0 0
    %699 = vmatmul.mubr.bf16.gmra.mrb[0].mxu0 %v591
    %v700 = vpop.f32.mrb[0].mxu0
    %v701 = vadd.f32 %v616, %v700
    %v702 = vpop.f32.mrb[0].mxu0
    %v703 = vpop.f32.mrb[0].mxu0
    %v704 = vadd.f32 %v616, %v703
    %v705 = vpop.f32.mrb[0].mxu0
    %706 = vmatprep.mubr.bf16.mxu0 0
    %707 = vmatmul.mubr.bf16.gmra.mrb[0].mxu0 %v592
    %v708 = vpop.f32.mrb[0].mxu0
    %v709 = vadd.f32 %v616, %v708
    %v710 = vpop.f32.mrb[0].mxu0
    %v711 = vpop.f32.mrb[0].mxu0
    %v712 = vadd.f32 %v616, %v711
    %v713 = vpop.f32.mrb[0].mxu0
    %714 = vdwg.mxu0
    %s715 = sld [smem:[#allocation2 + $0x3]]
    %vm716 = vcmp.ge.f32.partialorder %v701, 0.0
    %vm717 = vcmp.ge.f32.partialorder %v704, 0.0
    %vm718 = vcmp.ge.f32.partialorder %v709, 0.0
    %vm719 = vcmp.ge.f32.partialorder %v712, 0.0
    %v720 = vstv %s715
    %v721 = vmul.f32 %v720, %v701
    %v722 = vmul.f32 %v720, %v704
    %v723 = vmul.f32 %v720, %v709
    %v724 = vmul.f32 %v720, %v712
    %v725 = vsel %vm716, %v701, %v721
    %v726 = vsel %vm717, %v704, %v722
    %v727 = vsel %vm718, %v709, %v723
    %v728 = vsel %vm719, %v712, %v724
    %v729 = vpack.c.bf16 %v726, %v725
    %v730 = vpack.c.bf16 %v728, %v727
    %s731 = scalar_lea.vmem [#allocation5], 320
    %v732 = vld [vmem:[%s731] sm:$0xf]
    %v733 = vld [vmem:[%s731 + $0x4] sm:$0xf]
    %v734 = vld [vmem:[%s731 + $0x8] sm:$0xf]
    %v735 = vld [vmem:[%s731 + $0xc] sm:$0xf]
    %v736 = vld [vmem:[%s731 + $0x10] sm:$0xf]
    %v737 = vld [vmem:[%s731 + $0x14] sm:$0xf]
    %v738 = vld [vmem:[%s731 + $0x18] sm:$0xf]
    %v739 = vld [vmem:[%s731 + $0x1c] sm:$0xf]
    %v740 = vld [vmem:[%s731 + $0x20] sm:$0xf]
    %v741 = vld [vmem:[%s731 + $0x24] sm:$0xf]
    %v742 = vld [vmem:[%s731 + $0x28] sm:$0xf]
    %v743 = vld [vmem:[%s731 + $0x2c] sm:$0xf]
    %v744 = vld [vmem:[%s731 + $0x30] sm:$0xf]
    %v745 = vld [vmem:[%s731 + $0x34] sm:$0xf]
    %v746 = vld [vmem:[%s731 + $0x38] sm:$0xf]
    %v747 = vld [vmem:[%s731 + $0x3c] sm:$0xf]
    %s748 = scalar_lea.vmem %s3, 5
    %v749 = vld [vmem:[%s748] sm:$0x1]
    %v751 = vlaneseq
    %v752 = vshrl.u32 %v751, 7
    %v753 = vsub.s32 0, %v752
    %v754 = vrot.slane %v749, %v753
    %v772 = vunpack.c.l.b16 %v732
    %v773 = vunpack.c.l.b16 %v733
    %v774 = vunpack.c.l.b16 %v734
    %v775 = vunpack.c.l.b16 %v735
    %v776 = vunpack.c.l.b16 %v736
    %v777 = vunpack.c.l.b16 %v737
    %v778 = vunpack.c.l.b16 %v738
    %v779 = vunpack.c.l.b16 %v739
    %v780 = vunpack.c.l.b16 %v740
    %v781 = vunpack.c.l.b16 %v741
    %v782 = vunpack.c.l.b16 %v742
    %v783 = vunpack.c.l.b16 %v743
    %v784 = vunpack.c.l.b16 %v744
    %v785 = vunpack.c.l.b16 %v745
    %v786 = vunpack.c.l.b16 %v746
    %v787 = vunpack.c.l.b16 %v747
    %v788 = vpack.c.b16 %v773, %v772
    %v789 = vpack.c.b16 %v775, %v774
    %v790 = vpack.c.b16 %v777, %v776
    %v791 = vpack.c.b16 %v779, %v778
    %v792 = vpack.c.b16 %v781, %v780
    %v793 = vpack.c.b16 %v783, %v782
    %v794 = vpack.c.b16 %v785, %v784
    %v795 = vpack.c.b16 %v787, %v786
    %804 = vmatprep.subr.bf16.mxu0 0
    %805 = vmatpush1.bf16.msra.mxu0 %v788
    %806 = vmatprep.subr.bf16.mxu0 0
    %807 = vmatpush1.bf16.msra.mxu0 %v789
    %808 = vmatprep.subr.bf16.mxu0 0
    %809 = vmatpush1.bf16.msra.mxu0 %v790
    %810 = vmatprep.subr.bf16.mxu0 0
    %811 = vmatpush1.bf16.msra.mxu0 %v791
    %812 = vmatprep.subr.bf16.mxu0 0
    %813 = vmatpush1.bf16.msra.mxu0 %v792
    %814 = vmatprep.subr.bf16.mxu0 0
    %815 = vmatpush1.bf16.msra.mxu0 %v793
    %816 = vmatprep.subr.bf16.mxu0 0
    %817 = vmatpush1.bf16.msra.mxu0 %v794
    %818 = vmatprep.subr.bf16.mxu0 0
    %819 = vmatpush1.bf16.msra.mxu0 %v795
    %820 = vmatprep.subr.bf16.mxu0 0
    %821 = vmatpush1.bf16.msra.mxu0 0
    %822 = vmatprep.subr.bf16.mxu0 0
    %823 = vmatpush1.bf16.msra.mxu0 0
    %824 = vmatprep.subr.bf16.mxu0 0
    %825 = vmatpush1.bf16.msra.mxu0 0
    %826 = vmatprep.subr.bf16.mxu0 0
    %827 = vmatpush1.bf16.msra.mxu0 0
    %828 = vmatprep.subr.bf16.mxu0 0
    %829 = vmatpush1.bf16.msra.mxu0 0
    %830 = vmatprep.subr.bf16.mxu0 0
    %831 = vmatpush1.bf16.msra.mxu0 0
    %832 = vmatprep.subr.bf16.mxu0 0
    %833 = vmatpush1.bf16.msra.mxu0 0
    %834 = vmatprep.subr.bf16.mxu0 0
    %835 = vmatpush1.bf16.msra.mxu0 0
    %836 = vmatprep.mubr.bf16.mxu0 0
    %837 = vmatmul.mubr.bf16.gmra.mrb[0].mxu0 %v729
    %v838 = vpop.f32.mrb[0].mxu0
    %v839 = vadd.f32 %v754, %v838
    %v840 = vpop.f32.mrb[0].mxu0
    %v841 = vpop.f32.mrb[0].mxu0
    %v842 = vadd.f32 %v754, %v841
    %v843 = vpop.f32.mrb[0].mxu0
    %844 = vmatprep.mubr.bf16.mxu0 0
    %845 = vmatmul.mubr.bf16.gmra.mrb[0].mxu0 %v730
    %v846 = vpop.f32.mrb[0].mxu0
    %v847 = vadd.f32 %v754, %v846
    %v848 = vpop.f32.mrb[0].mxu0
    %v849 = vpop.f32.mrb[0].mxu0
    %v850 = vadd.f32 %v754, %v849
    %v851 = vpop.f32.mrb[0].mxu0
    %852 = vdwg.mxu0
    %853 = vst [vmem:[%s5] sm:$0xff] %v839
    %854 = vst [vmem:[%s5 + $0x8] sm:$0xff] %v842
    %855 = vst [vmem:[%s5 + $0x10] sm:$0xff] %v847
    %856 = vst [vmem:[%s5 + $0x18] sm:$0xff] %v850
    // Predicated region
    $region26: #{forward.1} parent=1 // pred_check
      _
    $region27: #{forward.1} parent=1 // pred_check_branch
      %858 = sbr.rel (0) target = $region29
    $region28: #{forward.1} parent=1 // pred_region
      _
    $region29: #{forward.1} parent=1 // pred_fallthru
      _
    // Predicated region
    $region30: #{forward.1} parent=1 // pred_check
      _
    $region31: #{forward.1} parent=1 // pred_check_branch
      %860 = sbr.rel (0) target = $region33
    $region32: #{forward.1} parent=1 // pred_region
      _
    $region33: #{forward.1} parent=1 // pred_fallthru
      _
    // Predicated region
    $region34: #{forward.1} parent=1 // pred_check
      _
    $region35: #{forward.1} parent=1 // pred_check_branch
      %862 = sbr.rel (0) target = $region37
    $region36: #{forward.1} parent=1 // pred_region
      _
    $region37: #{forward.1} parent=1 // pred_fallthru
      _
    // Predicated region
    $region38: #{forward.1} parent=1 // pred_check
      _
    $region39: #{forward.1} parent=1 // pred_check_branch
      %864 = sbr.rel (0) target = $region41
    $region40: #{forward.1} parent=1 // pred_region
      _
    $region41: #{forward.1} parent=1 // pred_fallthru
      _
    %865 = vsyncpa [#allocation3], 1
    %866 = vsyncpa [#allocation4], 1

</llo_original>
